<compile_context>
chip_gen: v7x
topology: tpu7x:2x2x1
jax: 0.10.0
libtpu: 0.0.40
codegen_flags: <defaults>
</compile_context>

<pallas_src>
import functools

import numpy as np
import jax
import jax.numpy as jnp
from jax.experimental import pallas as pl
from jax.experimental.pallas import tpu as pltpu


def _yolo_decode_kernel(anchors_ref, x_ref, gxy_ref, o_ref, *, stride):
    """Decode one (batch, anchor, grid-tile) block.

    anchors_ref: SMEM (nA, 2) f32 -- original (un-scaled) anchors.
    x_ref:   VMEM (1, 1, A, Gt)   raw logits, attrs on sublanes, grid on lanes.
    gxy_ref: VMEM (2, Gt) f32     precomputed grid_x / grid_y offsets.
    o_ref:   VMEM (1, 1, A, Gt)   decoded output, lane-dense (grid on lanes).
    """
    a_idx = pl.program_id(1)                                  # which anchor
    A, Gt = x_ref.shape[2], x_ref.shape[3]

    pred = x_ref[0, 0].astype(jnp.float32)                    # (A, Gt)
    sig = jax.nn.sigmoid(pred)                                # rows 2,3 unused (cheap)

    row = jax.lax.broadcasted_iota(jnp.int32, (A, Gt), 0)     # sublane index
    gx = gxy_ref[0:1, :]                                      # (1, Gt)
    gy = gxy_ref[1:2, :]                                      # (1, Gt)
    # grid offset: gx on row 0, gy on row 1, 0 on every other row.
    grid_off = jnp.where(row == 0, gx, jnp.where(row == 1, gy, jnp.float32(0.0)))
    # rows 0,1 are scaled to image pixels; rows >= 4 (conf/cls) stay as sigmoid.
    scale = jnp.where(row < 2, jnp.float32(stride), jnp.float32(1.0))
    dec = (sig + grid_off) * scale                            # (A, Gt)

    # rows 2,3: exp(w|h) * anchor.  exp limited to the two w/h rows (EUP);
    # (anchor/stride) * stride cancels, so the raw anchor is used directly.
    aw = anchors_ref[a_idx, 0]
    ah = anchors_ref[a_idx, 1]
    bw = jnp.exp(pred[2:3, :]) * aw                           # (1, Gt)
    bh = jnp.exp(pred[3:4, :]) * ah                           # (1, Gt)
    dec = jnp.where(row == 2, bw, dec)
    dec = jnp.where(row == 3, bh, dec)

    o_ref[0, 0] = dec.astype(o_ref.dtype)                     # lane-dense store


def _choose_g2_tile(G2):
    """Tile the flattened grid axis only when it is large and divides evenly."""
    if G2 <= 2048:
        return G2
    for cand in (2048, 1536, 1024, 512, 384, 256, 128):       # multiples of 128
        if G2 % cand == 0:
            return cand
    return G2                                                 # full-dim block


def yolo_layer_forward(x_nchw, anchors, num_classes, img_dim):
    nB, C, nG, nG_ = x_nchw.shape
    assert nG == nG_
    nA = anchors.shape[0]
    A = 5 + num_classes
    assert C == nA * A, "channels must equal num_anchors * (5 + num_classes)"
    stride = float(img_dim) / float(nG)
    G2 = nG * nG

    # Free contiguous view: attrs on sublanes, flattened grid on lanes.
    # dtype is left untouched -- bf16 activations are fine (kernel casts to f32).
    xr = x_nchw.reshape(nB, nA, A, G2)
    anchors_f32 = anchors.astype(jnp.float32)

    # Tiny precomputed grid offsets: avoids per-step integer div/mod in-kernel.
    gx = jnp.tile(jnp.arange(nG, dtype=jnp.float32), nG)      # g %  nG
    gy = jnp.repeat(jnp.arange(nG, dtype=jnp.float32), nG)    # g // nG
    gxy = jnp.stack([gx, gy], axis=0)                         # (2, G2)

    gt = _choose_g2_tile(G2)
    n_t = G2 // gt

    kernel = functools.partial(_yolo_decode_kernel, stride=stride)

    # VMEM budget: double-buffered in/out/gxy blocks + headroom, capped at
    # 3/4 of the *physical* VMEM of whatever generation we are running on.
    def _pad(v, m):
        return (v + m - 1) // m * m

    in_bytes = _pad(A, 8) * _pad(gt, 128) * xr.dtype.itemsize
    out_bytes = _pad(A, 8) * _pad(gt, 128) * 4
    gxy_bytes = 8 * _pad(gt, 128) * 4
    vmem_need = 2 * (in_bytes + out_bytes + gxy_bytes)
    try:
        vmem_cap = getattr(pltpu.get_tpu_info(), "vmem_capacity_bytes", 64 << 20)
    except Exception:
        vmem_cap = 64 << 20                                   # conservative (v7x)
    vmem_limit = int(min(max(vmem_need + (4 << 20), 16 << 20), vmem_cap * 3 // 4))

    out = pl.pallas_call(
        kernel,
        out_shape=jax.ShapeDtypeStruct((nB, nA, A, G2), jnp.float32),
        grid_spec=pltpu.PrefetchScalarGridSpec(
            num_scalar_prefetch=1,                            # anchors -> SMEM
            grid=(nB, nA, n_t),
            in_specs=[
                pl.BlockSpec((1, 1, A, gt), lambda b, a, t, anch: (b, a, 0, t)),
                pl.BlockSpec((2, gt), lambda b, a, t, anch: (0, t)),
            ],
            out_specs=pl.BlockSpec((1, 1, A, gt), lambda b, a, t, anch: (b, a, 0, t)),
        ),
        compiler_params=pltpu.CompilerParams(
            dimension_semantics=("parallel", "parallel", "parallel"),
            vmem_limit_bytes=vmem_limit),
    )(anchors_f32, xr, gxy)

    # (nB, nA, A, G2) -> (nB, nA*G2, 5+nC).  The kernel stores stay lane-dense;
    # attrs-last is produced by one XLA transpose over the (small) decoded
    # tensor, which mirrors the reference's own permute(...).contiguous() pass.
    return jnp.transpose(out, (0, 1, 3, 2)).reshape(nB, nA * G2, A)


def yolo_layer_reference(x_nchw, anchors, num_classes, img_dim):
    """Pure-JAX transcription of the PyTorch forward (targets=None)."""
    nB, C, nG, _ = x_nchw.shape
    nA = anchors.shape[0]
    A = 5 + num_classes
    stride = float(img_dim) / float(nG)

    pred = x_nchw.astype(jnp.float32).reshape(nB, nA, A, nG, nG)
    pred = pred.transpose(0, 1, 3, 4, 2)
    sx = jax.nn.sigmoid(pred[..., 0])
    sy = jax.nn.sigmoid(pred[..., 1])
    w = pred[..., 2]
    h = pred[..., 3]
    conf = jax.nn.sigmoid(pred[..., 4])
    cls = jax.nn.sigmoid(pred[..., 5:])

    grid_x = jnp.broadcast_to(jnp.arange(nG, dtype=jnp.float32)[None, :], (nG, nG))
    grid_x = grid_x.reshape(1, 1, nG, nG)
    grid_y = jnp.broadcast_to(jnp.arange(nG, dtype=jnp.float32)[:, None], (nG, nG))
    grid_y = grid_y.reshape(1, 1, nG, nG)

    scaled = anchors.astype(jnp.float32) / stride
    anchor_w = scaled[:, 0].reshape(1, nA, 1, 1)
    anchor_h = scaled[:, 1].reshape(1, nA, 1, 1)

    bx = sx + grid_x
    by = sy + grid_y
    bw = jnp.exp(w) * anchor_w
    bh = jnp.exp(h) * anchor_h
    pred_boxes = jnp.stack([bx, by, bw, bh], axis=-1)

    return jnp.concatenate(
        [pred_boxes.reshape(nB, -1, 4) * stride,
         conf.reshape(nB, -1, 1),
         cls.reshape(nB, -1, num_classes)], axis=-1)


if __name__ == "__main__":
    # Small, deterministic config: 3 anchors, 3 classes -> 8 bbox attrs,
    # 16x16 grid, img_dim 64 (stride 4). Input channels = 3 * 8 = 24.
    nB, nG, img_dim = 2, 16, 64
    num_classes = 3
    anchors = jnp.array([[10.0, 13.0], [16.0, 30.0], [33.0, 23.0]],
                        dtype=jnp.float32)
    nA = anchors.shape[0]
    A = 5 + num_classes

    key = jax.random.PRNGKey(0)
    x = jax.random.normal(key, (nB, nA * A, nG, nG), dtype=jnp.float32)

    out = yolo_layer_forward(x, anchors, num_classes, img_dim)
    out = jax.block_until_ready(out)

    ref = yolo_layer_reference(x, anchors, num_classes, img_dim)
    assert out.shape == (nB, nA * nG * nG, A), out.shape
    np.testing.assert_allclose(np.asarray(out), np.asarray(ref),
                               rtol=1e-5, atol=1e-5)

    print("KERNEL_OK")
</pallas_src>

<mosaic_0001>
module attributes {stable_mosaic.version = 11 : i64} {
  func.func @_yolo_decode_kernel(%arg0: i32, %arg1: i32, %arg2: i32, %arg3: memref<3x2xf32, #tpu.memory_space<smem>>, %arg4: memref<1x1x8x256xf32, #tpu.memory_space<vmem>>, %arg5: memref<2x256xf32, #tpu.memory_space<vmem>>, %arg6: memref<1x1x8x256xf32, #tpu.memory_space<vmem>>) attributes {dimension_semantics = [#tpu.dimension_semantics<parallel>, #tpu.dimension_semantics<parallel>, #tpu.dimension_semantics<parallel>], iteration_bounds = array<i64: 2, 3, 1>, scalar_prefetch = 1 : i64, scratch_operands = 0 : i64, tpu.core_type = #tpu.core_type<tc>, window_params = [{transform_indices = @transform_0, window_bounds = array<i64: 1, 1, 8, 256>}, {transform_indices = @transform_1, window_bounds = array<i64: 2, 256>}, {transform_indices = @transform_2, window_bounds = array<i64: 1, 1, 8, 256>}]} {
    %c0 = arith.constant 0 : index
    %c0_0 = arith.constant 0 : index
    %c0_1 = arith.constant 0 : index
    %c0_2 = arith.constant 0 : index
    %0 = vector.load %arg4[%c0, %c0_0, %c0_1, %c0_2] : memref<1x1x8x256xf32, #tpu.memory_space<vmem>>, vector<1x1x8x256xf32>
    %1 = vector.shape_cast %0 : vector<1x1x8x256xf32> to vector<8x256xf32>
    %2 = arith.negf %1 : vector<8x256xf32>
    %3 = math.exp %2 : vector<8x256xf32>
    %cst = arith.constant 1.000000e+00 : f32
    %4 = vector.broadcast %cst : f32 to vector<8x256xf32>
    %5 = arith.addf %4, %3 : vector<8x256xf32>
    %6 = arith.divf %4, %5 : vector<8x256xf32>
    %7 = tpu.iota {dimensions = array<i32: 0>} : vector<8x256xi32>
    %c0_3 = arith.constant 0 : index
    %c0_4 = arith.constant 0 : index
    %8 = vector.load %arg5[%c0_3, %c0_4] : memref<2x256xf32, #tpu.memory_space<vmem>>, vector<1x256xf32>
    %c1 = arith.constant 1 : index
    %c0_5 = arith.constant 0 : index
    %9 = vector.load %arg5[%c1, %c0_5] : memref<2x256xf32, #tpu.memory_space<vmem>>, vector<1x256xf32>
    %c0_i32 = arith.constant 0 : i32
    %10 = vector.broadcast %c0_i32 : i32 to vector<8x256xi32>
    %11 = arith.cmpi eq, %7, %10 : vector<8x256xi32>
    %c1_i32 = arith.constant 1 : i32
    %12 = vector.broadcast %c1_i32 : i32 to vector<8x256xi32>
    %13 = arith.cmpi eq, %7, %12 : vector<8x256xi32>
    %cst_6 = arith.constant 0.000000e+00 : f32
    %14 = vector.shape_cast %9 : vector<1x256xf32> to vector<1x256xf32>
    %15 = vector.broadcast %14 : vector<1x256xf32> to vector<8x256xf32>
    %16 = vector.broadcast %cst_6 : f32 to vector<8x256xf32>
    %17 = arith.select %13, %15, %16 : vector<8x256xi1>, vector<8x256xf32>
    %18 = vector.shape_cast %8 : vector<1x256xf32> to vector<1x256xf32>
    %19 = vector.broadcast %18 : vector<1x256xf32> to vector<8x256xf32>
    %20 = arith.select %11, %19, %17 : vector<8x256xi1>, vector<8x256xf32>
    %c2_i32 = arith.constant 2 : i32
    %21 = vector.broadcast %c2_i32 : i32 to vector<8x256xi32>
    %22 = arith.cmpi slt, %7, %21 : vector<8x256xi32>
    %cst_7 = arith.constant 4.000000e+00 : f32
    %cst_8 = arith.constant 1.000000e+00 : f32
    %23 = vector.broadcast %cst_7 : f32 to vector<8x256xf32>
    %24 = vector.broadcast %cst_8 : f32 to vector<8x256xf32>
    %25 = arith.select %22, %23, %24 : vector<8x256xi1>, vector<8x256xf32>
    %26 = arith.addf %6, %20 : vector<8x256xf32>
    %27 = arith.mulf %26, %25 : vector<8x256xf32>
    %28 = arith.index_cast %arg1 : i32 to index
    %c0_9 = arith.constant 0 : index
    %29 = memref.load %arg3[%28, %c0_9] : memref<3x2xf32, #tpu.memory_space<smem>>
    %30 = arith.index_cast %arg1 : i32 to index
    %c1_10 = arith.constant 1 : index
    %31 = memref.load %arg3[%30, %c1_10] : memref<3x2xf32, #tpu.memory_space<smem>>
    %32 = vector.extract_strided_slice %1 {offsets = [2, 0], sizes = [1, 256], strides = [1, 1]} : vector<8x256xf32> to vector<1x256xf32>
    %33 = math.exp %32 : vector<1x256xf32>
    %34 = vector.broadcast %29 : f32 to vector<1x256xf32>
    %35 = arith.mulf %33, %34 : vector<1x256xf32>
    %36 = vector.extract_strided_slice %1 {offsets = [3, 0], sizes = [1, 256], strides = [1, 1]} : vector<8x256xf32> to vector<1x256xf32>
    %37 = math.exp %36 : vector<1x256xf32>
    %38 = vector.broadcast %31 : f32 to vector<1x256xf32>
    %39 = arith.mulf %37, %38 : vector<1x256xf32>
    %c2_i32_11 = arith.constant 2 : i32
    %40 = vector.broadcast %c2_i32_11 : i32 to vector<8x256xi32>
    %41 = arith.cmpi eq, %7, %40 : vector<8x256xi32>
    %42 = vector.shape_cast %35 : vector<1x256xf32> to vector<1x256xf32>
    %43 = vector.broadcast %42 : vector<1x256xf32> to vector<8x256xf32>
    %44 = arith.select %41, %43, %27 : vector<8x256xi1>, vector<8x256xf32>
    %c3_i32 = arith.constant 3 : i32
    %45 = vector.broadcast %c3_i32 : i32 to vector<8x256xi32>
    %46 = arith.cmpi eq, %7, %45 : vector<8x256xi32>
    %47 = vector.shape_cast %39 : vector<1x256xf32> to vector<1x256xf32>
    %48 = vector.broadcast %47 : vector<1x256xf32> to vector<8x256xf32>
    %49 = arith.select %46, %48, %44 : vector<8x256xi1>, vector<8x256xf32>
    %c0_12 = arith.constant 0 : index
    %c0_13 = arith.constant 0 : index
    %c0_14 = arith.constant 0 : index
    %c0_15 = arith.constant 0 : index
    %50 = vector.load %arg6[%c0_12, %c0_13, %c0_14, %c0_15] : memref<1x1x8x256xf32, #tpu.memory_space<vmem>>, vector<1x1x8x256xf32>
    %51 = vector.shape_cast %50 : vector<1x1x8x256xf32> to vector<8x256xf32>
    %52 = vector.shape_cast %49 : vector<8x256xf32> to vector<1x1x8x256xf32>
    tpu.vector_store %arg6[%c0_12, %c0_13, %c0_14, %c0_15], %52 {strides = array<i32>} : memref<1x1x8x256xf32, #tpu.memory_space<vmem>>, vector<1x1x8x256xf32>,
    return
  }
  func.func @transform_0(%arg0: i32, %arg1: i32, %arg2: i32, %arg3: memref<3x2xf32, #tpu.memory_space<smem>>) -> (i32, i32, i32, i32) {
    %c0_i32 = arith.constant 0 : i32
    %c0_i32_0 = arith.constant 0 : i32
    return %arg0, %arg1, %c0_i32, %arg2 : i32, i32, i32, i32
  }
  func.func @transform_1(%arg0: i32, %arg1: i32, %arg2: i32, %arg3: memref<3x2xf32, #tpu.memory_space<smem>>) -> (i32, i32) {
    %c0_i32 = arith.constant 0 : i32
    %c0_i32_0 = arith.constant 0 : i32
    return %c0_i32, %arg2 : i32, i32
  }
  func.func @transform_2(%arg0: i32, %arg1: i32, %arg2: i32, %arg3: memref<3x2xf32, #tpu.memory_space<smem>>) -> (i32, i32, i32, i32) {
    %c0_i32 = arith.constant 0 : i32
    %c0_i32_0 = arith.constant 0 : i32
    return %arg0, %arg1, %c0_i32, %arg2 : i32, i32, i32, i32
  }
}

</mosaic_0001>

<llo_original>
// kernel: tpu_custom_call.1
$region0: #{tpu_custom_call.1}
  #allocation0 [shape = 'u32[]', space=smem, size = 0x4, offset = 0x4, fixed_abs, tag = 'smem constant byte address 0x4 - core index']
  #allocation1 [shape = 'u32[144,128]{1,0:T(1,128)}', space=vmem, size = 0x12000, scoped, tag = 'internal scratch']
  #allocation2 [shape = 's32[1]{0}', space=sflag, size = 0x4, scoped, tag = 'scoped memory for tpu_custom_call.1']
  #allocation3 [shape = 'u8[2048]{0}', space=smem, size = 0x800, scoped, tag = 'prefetched SMEM operand 0']
  %s0 = inlined_call_operand.vmem [shape: f32[3,2], index: 0, kind: input, shape index: {}]
  %s1 = inlined_call_operand.hbm [shape: f32[2,3,8,256], index: 1, kind: input, shape index: {}]
  %s2 = inlined_call_operand.vmem [shape: f32[2,256], index: 2, kind: input, shape index: {}]
  %s3 = inlined_call_operand.hbm [shape: f32[2,3,8,256], index: 3, kind: output, shape index: {}]
  %s4 = sld [smem:[#allocation0]]
  $region45: #{tpu_custom_call.1} parent=0
    _
  %s6 = ssub.s32 1, %s4
  %s7 = scalar_select 0, %s6, %s4
  %s8 = sshll.u32 %s0, 4
  %s9 = int_to_ptr.vmem [resolvable:$true] %s8
  %11 = dma.vmem_to_smem %s9, 64, [#allocation3], [#allocation2]
  %12 = dma.done [#allocation2], 64
  %13 = sfence
  $region1: #{tpu_custom_call.1} parent=0
    #allocation4 [shape = 'u8[16384]{0}', space=vmem, size = 0x4000, scoped, tag = 'input window, operand 1']
    #allocation5 [shape = 's32[2]{0}', space=sflag, size = 0x8, scoped, tag = 'scoped memory for tpu_custom_call.1']
    #allocation6 [shape = 's32[2]{0}', space=sflag, size = 0x8, scoped, tag = 'scoped memory for tpu_custom_call.1']
    #allocation7 [shape = 'u8[16384]{0}', space=vmem, size = 0x4000, scoped, tag = 'output window, operand 0']
    %14 = vsyncpa [#allocation5], 0
    %s15 = scalar_lea.sflag [#allocation5], 1
    %16 = vsyncpa %s15, 0
    %17 = vsyncpa [#allocation6], 0
    %s18 = scalar_lea.sflag [#allocation6], 1
    %19 = vsyncpa %s18, 0
    loop: start=0, step=1, limit=8
    $region2: #{tpu_custom_call.1} parent=1 // loop_pre_header
      _
    $region3: #{tpu_custom_call.1} parent=1 // loop_header
      %s21 = sphi 0, %s25
      %p22 = scmp.ge.s32.totalorder %s21, 8
      %s28 = sphi 0, %s47
      %s29 = sphi 0, %s43
      %s30 = sphi 0, %s39
      %s31 = sphi 0, %s28
      %s32 = sphi 0, %s29
      %s33 = sphi 0, %s30
      %s34 = sphi 0, %s31
      %s35 = sphi 0, %s32
      %s36 = sphi 0, %s33
      %s54 = sphi 0, %s56
      %s57 = sphi 0, %s54
      %s58 = sphi 0, %s57
      %s74 = sphi 0, %s58
      %s80 = sphi 0, %s82
      %s83 = sphi 0, %s80
      %s84 = sphi 0, %s83
      %s100 = sphi 0, %s84
      %s110 = sphi 0, %s112
      %s113 = sphi 0, %s110
      %s114 = sphi 0, %s113
      %s130 = sphi 0, %s114
    $region4: #{tpu_custom_call.1} parent=1 // loop_header_branch
      %24 = sbr.rel (%p22) target = $region8
    $region5: #{tpu_custom_call.1} parent=1 // loop_body
      %s26 = ssub.s32 %s21, 1
      %s27 = ssub.s32 %s21, 2
      %s37 = sadd.s32 1, %s30
      %p38 = scmp.ge.s32.totalorder %s37, 1
      %s39 = scalar_select %p38, 0, %s37
      %s40 = sadd.s32 1, %s29
      %s41 = scalar_select %p38, %s40, %s29
      %p42 = scmp.ge.s32.totalorder %s41, 3
      %s43 = scalar_select %p42, 0, %s41
      %s44 = sadd.s32 1, %s28
      %s45 = scalar_select %p42, %s44, %s28
      %p46 = scmp.ge.s32.totalorder %s45, 2
      %s47 = scalar_select %p46, 0, %s45
      %s48 = ssub.s32 %s28, %s47
      %s49 = ssub.s32 %s29, %s43
      %s50 = sor.u32 %s48, %s49
      %s51 = ssub.s32 %s30, %s39
      %s52 = sor.u32 %s50, %s51
      %p53 = scmp.eq.s32.totalorder %s52, 0
      %s55 = sadd.s32 %s54, 1
      %s56 = scalar_select %p53, %s54, %s55
      %p59 = pneg %p53
      %p60 = scmp.eq.s32.totalorder %s21, 5
      %p61 = por %p59, %p60
      %p62 = scmp.ne.s32.totalorder %s54, %s57
      %p63 = scmp.eq.s32.totalorder %s21, 0
      %p64 = por %p62, %p63
      %p65 = scmp.ne.s32.totalorder %s54, %s57
      %p66 = scmp.eq.s32.totalorder %s26, 5
      %p67 = por %p65, %p66
      %p68 = scmp.ne.s32.totalorder %s57, %s58
      %p69 = scmp.eq.s32.totalorder %s26, 0
      %p70 = por %p68, %p69
      %p71 = scmp.ne.s32.totalorder %s57, %s58
      %p72 = scmp.eq.s32.totalorder %s27, 5
      %p73 = por %p71, %p72
      %p75 = scmp.ne.s32.totalorder %s58, %s74
      %p76 = scmp.eq.s32.totalorder %s27, 0
      %p77 = por %p75, %p76
      %s78 = ssub.s32 %s30, %s39
      %p79 = scmp.eq.s32.totalorder %s78, 0
      %s81 = sadd.s32 %s80, 1
      %s82 = scalar_select %p79, %s80, %s81
      %p85 = pneg %p79
      %p86 = scmp.eq.s32.totalorder %s21, 5
      %p87 = por %p85, %p86
      %p88 = scmp.ne.s32.totalorder %s80, %s83
      %p89 = scmp.eq.s32.totalorder %s21, 0
      %p90 = por %p88, %p89
      %p91 = scmp.ne.s32.totalorder %s80, %s83
      %p92 = scmp.eq.s32.totalorder %s26, 5
      %p93 = por %p91, %p92
      %p94 = scmp.ne.s32.totalorder %s83, %s84
      %p95 = scmp.eq.s32.totalorder %s26, 0
      %p96 = por %p94, %p95
      %p97 = scmp.ne.s32.totalorder %s83, %s84
      %p98 = scmp.eq.s32.totalorder %s27, 5
      %p99 = por %p97, %p98
      %p101 = scmp.ne.s32.totalorder %s84, %s100
      %p102 = scmp.eq.s32.totalorder %s27, 0
      %p103 = por %p101, %p102
      %s104 = ssub.s32 %s28, %s47
      %s105 = ssub.s32 %s29, %s43
      %s106 = sor.u32 %s104, %s105
      %s107 = ssub.s32 %s30, %s39
      %s108 = sor.u32 %s106, %s107
      %p109 = scmp.eq.s32.totalorder %s108, 0
      %s111 = sadd.s32 %s110, 1
      %s112 = scalar_select %p109, %s110, %s111
      %p115 = pneg %p109
      %p116 = scmp.eq.s32.totalorder %s21, 5
      %p117 = por %p115, %p116
      %p118 = scmp.ne.s32.totalorder %s110, %s113
      %p119 = scmp.eq.s32.totalorder %s21, 0
      %p120 = por %p118, %p119
      %p121 = scmp.ne.s32.totalorder %s110, %s113
      %p122 = scmp.eq.s32.totalorder %s26, 5
      %p123 = por %p121, %p122
      %p124 = scmp.ne.s32.totalorder %s113, %s114
      %p125 = scmp.eq.s32.totalorder %s26, 0
      %p126 = por %p124, %p125
      %p127 = scmp.ne.s32.totalorder %s113, %s114
      %p128 = scmp.eq.s32.totalorder %s27, 5
      %p129 = por %p127, %p128
      %p131 = scmp.ne.s32.totalorder %s114, %s130
      %p132 = scmp.eq.s32.totalorder %s27, 0
      %p133 = por %p131, %p132
      %p134 = scmp.le.s32.totalorder 1, %s21
      %p135 = scmp.lt.s32.totalorder %s21, 7
      %p136 = pnand %p134, %p135
      %p137 = pneg %p136
      // Predicated region
      $region9: #{tpu_custom_call.1} parent=5 // pred_check
        _
      $region10: #{tpu_custom_call.1} parent=5 // pred_check_branch
        %139 = sbr.rel (%p136) target = $region12
      $region11: #{tpu_custom_call.1} parent=5 // pred_region
        %s140 = ssub.s32 %s21, 1
        // Predicated region
        $region13: #{tpu_custom_call.1} parent=11 // pred_check
          %p141 = pneg %p96
        $region14: #{tpu_custom_call.1} parent=11 // pred_check_branch
          %143 = sbr.rel (%p141) target = $region16
        $region15: #{tpu_custom_call.1} parent=11 // pred_region
          %s144 = smul.u32 2, %s33
          %p145 = scmp.lt.s32.totalorder %s144, 1
          %s146 = scalar_select %p145, %s144, 1
          %s147 = smul.addr %s146, 2
          %s148 = scalar_lea.vmem %s2, %s147
          %s149 = smul.u32 2, %s33
        $region16: #{tpu_custom_call.1} parent=11 // pred_fallthru
          _
      $region12: #{tpu_custom_call.1} parent=5 // pred_fallthru
        _
      %p150 = scmp.lt.s32.totalorder %s21, 6
      // Predicated region
      $region17: #{tpu_custom_call.1} parent=5 // pred_check
        %p151 = pneg %p150
      $region18: #{tpu_custom_call.1} parent=5 // pred_check_branch
        %153 = sbr.rel (%p151) target = $region20
      $region19: #{tpu_custom_call.1} parent=5 // pred_region
        // Predicated region
        $region21: #{tpu_custom_call.1} parent=19 // pred_check
          %p154 = pneg %p64
        $region22: #{tpu_custom_call.1} parent=19 // pred_check_branch
          %156 = sbr.rel (%p154) target = $region24
        $region23: #{tpu_custom_call.1} parent=19 // pred_region
          %s157 = sand.u32 %s54, 1
          %s158 = scalar_lea.sflag [#allocation5], %s157
          %s159 = sand.u32 %s54, 1
          %s160 = smul.addr %s159, 16
          %s161 = scalar_lea.vmem [#allocation4], %s160
          %s162 = smul.u32 2, %s30
          %s164 = ssub.s32 256, 256
          %165 = vsyncadd %s158, %s164
          %s166 = smul.addr %s29, 2
          %s167 = sadd.s32 %s162, %s166
          %s168 = smul.addr %s28, 6
          %s169 = sadd.s32 %s167, %s168
          %s170 = smul.addr %s169, 128
          %s171 = scalar_lea.hbm %s1, %s170
          %s173 = sshll.u32 %s161, 4
          %s174 = int_to_ptr.vmem [resolvable:$true] %s173
          %176 = dma.hbm_to_vmem [thread:$0]  %s171, 256, %s174, %s158
        $region24: #{tpu_custom_call.1} parent=19 // pred_fallthru
          _
      $region20: #{tpu_custom_call.1} parent=5 // pred_fallthru
        _
      %p177 = scmp.le.s32.totalorder 1, %s21
      %p178 = scmp.lt.s32.totalorder %s21, 7
      %p179 = pnand %p177, %p178
      %p180 = pneg %p179
      // Predicated region
      $region25: #{tpu_custom_call.1} parent=5 // pred_check
        _
      $region26: #{tpu_custom_call.1} parent=5 // pred_check_branch
        %182 = sbr.rel (%p179) target = $region28
      $region27: #{tpu_custom_call.1} parent=5 // pred_region
        %s183 = ssub.s32 %s21, 1
        %s184 = sand.u32 %s57, 1
        %s185 = scalar_lea.sflag [#allocation5], %s184
        %s186 = sand.u32 %s57, 1
        %s187 = smul.addr %s186, 16
        %s188 = scalar_lea.vmem [#allocation4], %s187
        // Predicated region
        $region29: #{tpu_custom_call.1} parent=27 // pred_check
          %p189 = pneg %p70
        $region30: #{tpu_custom_call.1} parent=27 // pred_check_branch
          %191 = sbr.rel (%p189) target = $region32
        $region31: #{tpu_custom_call.1} parent=27 // pred_region
          %192 = dma.done %s185, 256
        $region32: #{tpu_custom_call.1} parent=27 // pred_fallthru
          _
        %s193 = sand.u32 %s57, 1
        %s194 = scalar_lea.sflag [#allocation5], %s193
        %s195 = sand.u32 %s57, 1
        %s196 = smul.addr %s195, 16
        %s197 = scalar_lea.vmem [#allocation4], %s196
        %p198 = pneg %p70
        %p199 = pneg %p67
        %s200 = smul.u32 2, %s33
        %p201 = scmp.lt.s32.totalorder %s200, 1
        %s202 = scalar_select %p201, %s200, 1
        %s203 = smul.addr %s202, 2
        %s204 = scalar_lea.vmem %s2, %s203
        %p205 = pneg %p96
        %p206 = pneg %p93
        %p207 = pneg %p126
        %p208 = pneg %p123
        %s209 = sand.u32 %s113, 1
        %s210 = scalar_lea.sflag [#allocation6], %s209
        %s211 = sand.u32 %s113, 1
        %s212 = smul.addr %s211, 16
        %s213 = scalar_lea.vmem [#allocation7], %s212
        %s214 = smul.u32 2, %s33
        %s215 = smul.u32 2, %s33
        %p216 = scmp.lt.s32.totalorder %s215, 1
        %s217 = scalar_select %p216, %s215, 1
        %s218 = smul.addr %s217, 2
        %s219 = scalar_lea.vmem %s2, %s218
        %s220 = smul.u32 2, %s33
        %s221 = smul.u32 2, %s33
        %v222 = vld [vmem:[%s188] sm:$0xff]
        %v223 = vld [vmem:[%s188 + $0x8] sm:$0xff]
        %v224 = vxor.u32 %v222, 2147483648
        %v225 = vxor.u32 %v223, 2147483648
        %v226 = vmul.f32 %v224, 1.442695
        %v227 = vpow.pop %v226
        %v228 = vmul.f32 %v225, 1.442695
        %v229 = vpow.pop %v228
        %v230 = vadd.f32 %v227, 1.0
        %v231 = vadd.f32 %v229, 1.0
        %v232 = vrcp.pop %v230
        %v233 = vmul.f32 1.0, %v232
        %v234 = vrcp.pop %v231
        %v235 = vmul.f32 1.0, %v234
        %v236 = vlaneseq
        %v237 = vshrl.u32 %v236, 7
        %v238 = vld [vmem:[%s219] ss:$2 sm:$0x3]
        %s239 = scalar_lea.vmem %s219, 1
        %v240 = vld [vmem:[%s239] ss:$2 sm:$0x3]
        %vm241 = vcmp.eq.s32.totalorder %v237, 0
        %vm242 = vcmp.eq.s32.totalorder %v237, 1
        %v244 = vlaneseq
        %v245 = vshrl.u32 %v244, 7
        %v246 = vsub.s32 0, %v245
        %v247 = vrot.slane %v240, %v246
        %v248 = vlaneseq
        %v249 = vshrl.u32 %v248, 7
        %v250 = vsub.s32 1, %v249
        %v251 = vrot.slane %v240, %v250
        %v254 = vsel %vm242, %v247, 0.0
        %v255 = vsel %vm242, %v251, 0.0
        %v257 = vlaneseq
        %v258 = vshrl.u32 %v257, 7
        %v259 = vsub.s32 0, %v258
        %v260 = vrot.slane %v238, %v259
        %v261 = vlaneseq
        %v262 = vshrl.u32 %v261, 7
        %v263 = vsub.s32 1, %v262
        %v264 = vrot.slane %v238, %v263
        %v267 = vsel %vm241, %v260, %v254
        %v268 = vsel %vm241, %v264, %v255
        %vm269 = vcmp.lt.s32.totalorder %v237, 2
        %v270 = vsel %vm269, 4.0, 1.0
        %v271 = vadd.f32 %v233, %v267
        %v272 = vadd.f32 %v235, %v268
        %v273 = vmul.f32 %v271, %v270
        %v274 = vmul.f32 %v272, %v270
        %s275 = smul.u32 %s32, 128
        %s276 = sld [smem:[#allocation3 + %s275]]
        %s277 = sadd.s32 %s275, 1
        %s278 = sld [smem:[#allocation3 + %s277]]
        %v279 = vmul.f32 %v222, 1.442695
        %v280 = vpow.pop %v279
        %v281 = vmul.f32 %v223, 1.442695
        %v282 = vpow.pop %v281
        %v283 = vstv %s276
        %v284 = vmul.f32 %v280, %v283
        %v285 = vmul.f32 %v282, %v283
        %v286 = vstv %s278
        %v287 = vmul.f32 %v280, %v286
        %v288 = vmul.f32 %v282, %v286
        %vm289 = vcmp.eq.s32.totalorder %v237, 2
        %v290 = vlaneseq
        %v291 = vshrl.u32 %v290, 7
        %v292 = vsub.s32 2, %v291
        %v293 = vrot.slane %v284, %v292
        %v294 = vlaneseq
        %v295 = vshrl.u32 %v294, 7
        %v296 = vsub.s32 2, %v295
        %v297 = vrot.slane %v285, %v296
        %v298 = vsel %vm289, %v293, %v273
        %v299 = vsel %vm289, %v297, %v274
        %vm300 = vcmp.eq.s32.totalorder %v237, 3
        %v301 = vlaneseq
        %v302 = vshrl.u32 %v301, 7
        %v303 = vsub.s32 3, %v302
        %v304 = vrot.slane %v287, %v303
        %v305 = vlaneseq
        %v306 = vshrl.u32 %v305, 7
        %v307 = vsub.s32 3, %v306
        %v308 = vrot.slane %v288, %v307
        %v309 = vsel %vm300, %v304, %v298
        %v310 = vsel %vm300, %v308, %v299
        %311 = vst [vmem:[%s213] sm:$0xff] %v309
        %312 = vst [vmem:[%s213 + $0x8] sm:$0xff] %v310
        %s313 = sand.u32 %s113, 1
        %s314 = scalar_lea.sflag [#allocation6], %s313
        %s315 = sand.u32 %s113, 1
        %s316 = smul.addr %s315, 16
        %s317 = scalar_lea.vmem [#allocation7], %s316
        // Predicated region
        $region33: #{tpu_custom_call.1} parent=27 // pred_check
          %p318 = pneg %p123
        $region34: #{tpu_custom_call.1} parent=27 // pred_check_branch
          %320 = sbr.rel (%p318) target = $region36
        $region35: #{tpu_custom_call.1} parent=27 // pred_region
          %s321 = smul.u32 2, %s33
          %s323 = ssub.s32 256, 256
          %324 = vsyncadd %s314, %s323
          %s325 = smul.addr %s32, 2
          %s326 = sadd.s32 %s321, %s325
          %s327 = smul.addr %s31, 6
          %s328 = sadd.s32 %s326, %s327
          %s329 = smul.addr %s328, 128
          %s330 = scalar_lea.hbm %s3, %s329
          %s332 = sshll.u32 %s317, 4
          %s333 = int_to_ptr.vmem [resolvable:$true] %s332
          %335 = dma.vmem_to_hbm [thread:$0]  %s333, 256, %s330, %s314
        $region36: #{tpu_custom_call.1} parent=27 // pred_fallthru
          _
      $region28: #{tpu_custom_call.1} parent=5 // pred_fallthru
        _
      %p336 = scmp.le.s32.totalorder 2, %s21
      // Predicated region
      $region37: #{tpu_custom_call.1} parent=5 // pred_check
        %p337 = pneg %p336
      $region38: #{tpu_custom_call.1} parent=5 // pred_check_branch
        %339 = sbr.rel (%p337) target = $region40
      $region39: #{tpu_custom_call.1} parent=5 // pred_region
        %s340 = ssub.s32 %s21, 2
        // Predicated region
        $region41: #{tpu_custom_call.1} parent=39 // pred_check
          %p341 = pneg %p129
        $region42: #{tpu_custom_call.1} parent=39 // pred_check_branch
          %343 = sbr.rel (%p341) target = $region44
        $region43: #{tpu_custom_call.1} parent=39 // pred_region
          %s344 = sand.u32 %s114, 1
          %s345 = scalar_lea.sflag [#allocation6], %s344
          %s346 = sand.u32 %s114, 1
          %s347 = smul.addr %s346, 16
          %s348 = scalar_lea.vmem [#allocation7], %s347
          %349 = dma.done %s345, 256
        $region44: #{tpu_custom_call.1} parent=39 // pred_fallthru
          _
      $region40: #{tpu_custom_call.1} parent=5 // pred_fallthru
        _
    $region6: #{tpu_custom_call.1} parent=1 // loop_footer
      %s25 = sadd.s32 1, %s21
    $region7: #{tpu_custom_call.1} parent=1 // loop_footer_branch
      %20 = sbr.rel target = $region3
    $region8: #{tpu_custom_call.1} parent=1 // loop_exit
      _
    %350 = vsyncpa [#allocation5], 1
    %s351 = scalar_lea.sflag [#allocation5], 1
    %352 = vsyncpa %s351, 1
    %353 = vsyncpa [#allocation6], 1
    %s354 = scalar_lea.sflag [#allocation6], 1
    %355 = vsyncpa %s354, 1

</llo_original>
